<compile_context>
chip_gen: v5e
topology: v5e:2x2
jax: 0.10.0
libtpu: 0.0.40
codegen_flags: <defaults>
</compile_context>

<pallas_src>
import jax
import jax.numpy as jnp
from jax.experimental import pallas as pl
from jax.experimental.pallas import tpu as pltpu

NUM_LAYERS = 3  # static: layer loop is unrolled inside the kernel


# --------------------------------------------------------------------------
# Kernel 1: serial T-step stacked tanh-RNN recurrence (grid = (T,))
# --------------------------------------------------------------------------
def _decoder_rnn_kernel(xp_ref, ctx_ref, whh0_ref, wcat_ref, bcat_ref,
                        htop_ref, h0_ref, xh_ref):
    """One teacher-forced decode step.

    Persistent VMEM scratches (live across grid iterations):
      h0_ref : (B, H)        layer-0 hidden state
      xh_ref : (L-1, B, 2H)  for each upper layer l (j = l-1):
                             [j, :, :H] = hidden from layer l-1 (this step),
                             [j, :, H:] = layer l's previous hidden.
    The T axis MUST stay "arbitrary" (serial); the init below runs at t == 0.
    """
    t = pl.program_id(0)
    H = ctx_ref.shape[1]

    @pl.when(t == 0)
    def _init():
        # hidden_tm1 = context.repeat(L, 1).view(L, B, H)
        ctx = ctx_ref[...]
        h0_ref[...] = ctx
        for j in range(NUM_LAYERS - 1):
            xh_ref[j, :, H:] = ctx

    # ---- layer 0: input projection hoisted outside; only H x H recurrence ----
    h0 = jnp.tanh(xp_ref[0] + jnp.dot(h0_ref[...], whh0_ref[...],
                                      preferred_element_type=jnp.float32))
    h0_ref[...] = h0
    xh_ref[0, :, :H] = h0

    # ---- layers 1..L-1: fused [h_below, h_prev] @ [W_ih; W_hh] (no concat) ----
    for l in range(1, NUM_LAYERS):
        j = l - 1
        pre = jnp.dot(xh_ref[j], wcat_ref[j],
                      preferred_element_type=jnp.float32) + bcat_ref[j]
        h = jnp.tanh(pre)
        xh_ref[j, :, H:] = h                 # this layer's hidden for step t+1
        if l < NUM_LAYERS - 1:
            xh_ref[j + 1, :, :H] = h         # input slot of the layer above
        else:
            htop_ref[0] = h                  # top-layer hidden -> streamed out


def _run_decoder_rnn(xp, context, w_hh0, w_cat, b_cat):
    T, B, H = xp.shape
    L = NUM_LAYERS
    grid_spec = pltpu.PrefetchScalarGridSpec(
        num_scalar_prefetch=0,
        grid=(T,),
        in_specs=[
            pl.BlockSpec((1, B, H), lambda t: (t, 0, 0)),          # xp[t] streamed
            pl.BlockSpec((B, H), lambda t: (0, 0)),                # context
            pl.BlockSpec((H, H), lambda t: (0, 0)),                # w_hh0
            pl.BlockSpec((L - 1, 2 * H, H), lambda t: (0, 0, 0)),  # [W_ih;W_hh]
            pl.BlockSpec((L - 1, 1, H), lambda t: (0, 0, 0)),      # b_ih+b_hh
        ],
        out_specs=pl.BlockSpec((1, B, H), lambda t: (t, 0, 0)),    # h_top[t]
        scratch_shapes=[
            pltpu.VMEM((B, H), jnp.float32),           # layer-0 hidden
            pltpu.VMEM((L - 1, B, 2 * H), jnp.float32),  # [x, h] per upper layer
        ],
    )
    return pl.pallas_call(
        _decoder_rnn_kernel,
        out_shape=jax.ShapeDtypeStruct((T, B, H), jnp.float32),
        grid_spec=grid_spec,
        compiler_params=pltpu.CompilerParams(
            dimension_semantics=("arbitrary",),   # serial recurrence over T
            vmem_limit_bytes=32 * 1024 * 1024),
    )(xp, context, w_hh0, w_cat, b_cat)


# --------------------------------------------------------------------------
# Kernel 2: deferred fc  —  (T*B, H) @ (H, V) + b, tiled over V ("parallel")
# --------------------------------------------------------------------------
def _fc_kernel(h_ref, w_ref, b_ref, o_ref):
    o_ref[...] = (jnp.dot(h_ref[...], w_ref[...],
                          preferred_element_type=jnp.float32) + b_ref[...])


def _run_fc(h2d, w_fc, b_fc, tv=512):
    R, H = h2d.shape
    V = w_fc.shape[1]
    tv = min(tv, V)
    assert V % tv == 0, (V, tv)
    grid_spec = pltpu.PrefetchScalarGridSpec(
        num_scalar_prefetch=0,
        grid=(V // tv,),
        in_specs=[
            pl.BlockSpec((R, H), lambda j: (0, 0)),
            pl.BlockSpec((H, tv), lambda j: (0, j)),
            pl.BlockSpec((1, tv), lambda j: (0, j)),
        ],
        out_specs=pl.BlockSpec((R, tv), lambda j: (0, j)),
    )
    return pl.pallas_call(
        _fc_kernel,
        out_shape=jax.ShapeDtypeStruct((R, V), jnp.float32),
        grid_spec=grid_spec,
        compiler_params=pltpu.CompilerParams(
            dimension_semantics=("parallel",)),
    )(h2d, w_fc, b_fc)


# --------------------------------------------------------------------------
# Fused forward: XLA input projection -> recurrent kernel -> deferred fc
# --------------------------------------------------------------------------
@jax.jit
def _decoder_pallas(packed, x_all, context):
    T, B, D = x_all.shape
    H = context.shape[1]
    V = packed["w_fc"].shape[1]
    # Non-recurrent layer-0 input projection for ALL steps: one big matmul,
    # kept out of the recurrent kernel's VMEM (wrapper-side reshape is free).
    xp = (x_all.reshape(T * B, D) @ packed["w_ih0"]
          + packed["b0"]).reshape(T, B, H)
    h_top = _run_decoder_rnn(xp, context, packed["w_hh0"],
                             packed["w_cat"], packed["b_cat"])
    logits = _run_fc(h_top.reshape(T * B, H), packed["w_fc"], packed["b_fc"])
    return logits.reshape(T, B, V)


# --------------------------------------------------------------------------
# Parameter handling
# --------------------------------------------------------------------------
def init_params(key, d_in, hidden, vocab):
    """nn.RNN-style parameters, pre-transposed for `x @ W`."""
    ks = jax.random.split(key, 8)
    s = 0.1
    return {
        "w_ih0": s * jax.random.normal(ks[0], (d_in, hidden), jnp.float32),
        "w_ih":  s * jax.random.normal(ks[1], (NUM_LAYERS - 1, hidden, hidden), jnp.float32),
        "w_hh":  s * jax.random.normal(ks[2], (NUM_LAYERS, hidden, hidden), jnp.float32),
        "b_ih":  s * jax.random.normal(ks[3], (NUM_LAYERS, 1, hidden), jnp.float32),
        "b_hh":  s * jax.random.normal(ks[4], (NUM_LAYERS, 1, hidden), jnp.float32),
        "w_fc":  s * jax.random.normal(ks[5], (hidden, vocab), jnp.float32),
        "b_fc":  s * jax.random.normal(ks[6], (1, vocab), jnp.float32),
    }


def pack_params(p):
    """Pack per-layer weights for the fused kernel: [W_ih; W_hh], b_ih+b_hh."""
    return {
        "w_ih0": p["w_ih0"],                                           # (D_in, H)
        "b0":    p["b_ih"][0] + p["b_hh"][0],                          # (1, H)
        "w_hh0": p["w_hh"][0],                                         # (H, H)
        "w_cat": jnp.concatenate([p["w_ih"], p["w_hh"][1:]], axis=1),  # (L-1, 2H, H)
        "b_cat": p["b_ih"][1:] + p["b_hh"][1:],                        # (L-1, 1, H)
        "w_fc":  p["w_fc"],                                            # (H, V)
        "b_fc":  p["b_fc"],                                            # (1, V)
    }


# --------------------------------------------------------------------------
# Decoder forward (teacher forcing)
# --------------------------------------------------------------------------
def decoder_forward(params, embedding, context, inputs, eos_index=0,
                    sample_key=None):
    """Returns (logits (T,B,V), sampled indices (T,B)) matching
    sequence_of_logits / sequence_of_indices of the original module."""
    T, B = inputs.shape
    D = embedding.shape[1]
    packed = pack_params(params)

    # Teacher-forced inputs are known up front: step 0 = embedding[eos],
    # step t>0 = embedding[inputs[t-1]].  Pre-gather as (T, B, D_in).
    x0 = jnp.broadcast_to(embedding[eos_index][None, None, :], (1, B, D))
    x_all = jnp.concatenate([x0, embedding[inputs[:-1]]], axis=0) if T > 1 else x0

    logits = _decoder_pallas(packed, x_all, context)            # (T, B, V)

    # torch.multinomial(softmax(logits), 1): categorical is shift-invariant,
    # so sample from the logits directly (all T steps batched).
    if sample_key is None:
        sample_key = jax.random.PRNGKey(42)
    keys = jax.random.split(sample_key, T)
    indices = jax.vmap(lambda k, lg: jax.random.categorical(k, lg, axis=-1))(
        keys, logits)                                           # (T, B)

    # TODO(synk): free-running branch (samples fed back, data-dependent EOS
    # early stop) and drop_prob word-dropout are not expressible as a static
    # fused grid; teacher-forcing path only.
    return logits, indices


# --------------------------------------------------------------------------
# Pure-JAX reference (correctness check)
# --------------------------------------------------------------------------
def _ref_forward(params, embedding, context, inputs, eos_index):
    T, B = inputs.shape
    H = context.shape[1]
    hidden = jnp.broadcast_to(context[None], (NUM_LAYERS, B, H))
    x = jnp.broadcast_to(embedding[eos_index][None, :], (B, embedding.shape[1]))
    logits_list = []
    for t in range(T):
        layer_in = x
        new_h = []
        for l in range(NUM_LAYERS):
            w_in = params["w_ih0"] if l == 0 else params["w_ih"][l - 1]
            pre = (layer_in @ w_in + hidden[l] @ params["w_hh"][l]
                   + params["b_ih"][l] + params["b_hh"][l])
            h = jnp.tanh(pre)
            new_h.append(h)
            layer_in = h
        hidden = jnp.stack(new_h)
        logits_list.append(layer_in @ params["w_fc"] + params["b_fc"])
        x = embedding[inputs[t]]
    return jnp.stack(logits_list)


if __name__ == "__main__":
    # Small shapes consistent with the module's forward
    B, D_IN, HID, VOCAB, T = 8, 32, 64, 128, 4
    EOS_INDEX = 0

    root = jax.random.PRNGKey(0)
    k_par, k_emb, k_ctx, k_inp = jax.random.split(root, 4)

    params = init_params(k_par, D_IN, HID, VOCAB)
    embedding = 0.1 * jax.random.normal(k_emb, (VOCAB, D_IN), jnp.float32)
    context = jax.random.normal(k_ctx, (B, HID), jnp.float32)        # (B, H)
    inputs = jax.random.randint(k_inp, (T, B), 0, VOCAB, jnp.int32)  # teacher tokens

    logits, indices = decoder_forward(params, embedding, context, inputs,
                                      eos_index=EOS_INDEX)
    logits = jax.block_until_ready(logits)
    indices = jax.block_until_ready(indices)

    ref_logits = _ref_forward(params, embedding, context, inputs, EOS_INDEX)

    assert logits.shape == (T, B, VOCAB), logits.shape
    assert indices.shape == (T, B), indices.shape
    max_err = float(jnp.max(jnp.abs(logits - ref_logits)))
    assert jnp.allclose(logits, ref_logits, atol=1e-4, rtol=1e-4), (
        f"logits mismatch, max abs err = {max_err}")
    assert bool(jnp.all((indices >= 0) & (indices < VOCAB)))

    print("KERNEL_OK")
</pallas_src>

<mosaic_0001>
module attributes {stable_mosaic.version = 11 : i64} {
  func.func @_decoder_rnn_kernel(%arg0: i32, %arg1: memref<1x8x64xf32, #tpu.memory_space<vmem>>, %arg2: memref<8x64xf32, #tpu.memory_space<vmem>>, %arg3: memref<64x64xf32, #tpu.memory_space<vmem>>, %arg4: memref<2x128x64xf32, #tpu.memory_space<vmem>>, %arg5: memref<2x1x64xf32, #tpu.memory_space<vmem>>, %arg6: memref<1x8x64xf32, #tpu.memory_space<vmem>>, %arg7: memref<8x64xf32, #tpu.memory_space<vmem>>, %arg8: memref<2x8x128xf32, #tpu.memory_space<vmem>>) attributes {dimension_semantics = [#tpu.dimension_semantics<arbitrary>], iteration_bounds = array<i64: 4>, scalar_prefetch = 0 : i64, scratch_operands = 2 : i64, tpu.core_type = #tpu.core_type<tc>, window_params = [{transform_indices = @transform_0, window_bounds = array<i64: 1, 8, 64>}, {pipeline_mode = #tpu.pipeline_mode<synchronous>, transform_indices = @transform_1, window_bounds = array<i64: 8, 64>}, {pipeline_mode = #tpu.pipeline_mode<synchronous>, transform_indices = @transform_2, window_bounds = array<i64: 64, 64>}, {pipeline_mode = #tpu.pipeline_mode<synchronous>, transform_indices = @transform_3, window_bounds = array<i64: 2, 128, 64>}, {pipeline_mode = #tpu.pipeline_mode<synchronous>, transform_indices = @transform_4, window_bounds = array<i64: 2, 1, 64>}, {transform_indices = @transform_5, window_bounds = array<i64: 1, 8, 64>}]} {
    %c0_i32 = arith.constant 0 : i32
    %0 = arith.cmpi eq, %arg0, %c0_i32 : i32
    %1 = arith.extui %0 : i1 to i32
    %c0_i32_0 = arith.constant 0 : i32
    %2 = arith.cmpi ne, %1, %c0_i32_0 : i32
    scf.if %2 {
      %c0_42 = arith.constant 0 : index
      %c0_43 = arith.constant 0 : index
      %46 = vector.load %arg2[%c0_42, %c0_43] : memref<8x64xf32, #tpu.memory_space<vmem>>, vector<8x64xf32>
      %c0_44 = arith.constant 0 : index
      %c0_45 = arith.constant 0 : index
      %47 = vector.load %arg7[%c0_44, %c0_45] : memref<8x64xf32, #tpu.memory_space<vmem>>, vector<8x64xf32>
      tpu.vector_store %arg7[%c0_44, %c0_45], %46 {strides = array<i32>} : memref<8x64xf32, #tpu.memory_space<vmem>>, vector<8x64xf32>,
      %c0_46 = arith.constant 0 : index
      %c0_47 = arith.constant 0 : index
      %c64_48 = arith.constant 64 : index
      %48 = vector.load %arg8[%c0_46, %c0_47, %c64_48] : memref<2x8x128xf32, #tpu.memory_space<vmem>>, vector<1x8x64xf32>
      %49 = vector.shape_cast %48 : vector<1x8x64xf32> to vector<8x64xf32>
      %50 = vector.shape_cast %46 : vector<8x64xf32> to vector<1x8x64xf32>
      tpu.vector_store %arg8[%c0_46, %c0_47, %c64_48], %50 {strides = array<i32>} : memref<2x8x128xf32, #tpu.memory_space<vmem>>, vector<1x8x64xf32>,
      %c1_49 = arith.constant 1 : index
      %c0_50 = arith.constant 0 : index
      %c64_51 = arith.constant 64 : index
      %51 = vector.load %arg8[%c1_49, %c0_50, %c64_51] : memref<2x8x128xf32, #tpu.memory_space<vmem>>, vector<1x8x64xf32>
      %52 = vector.shape_cast %51 : vector<1x8x64xf32> to vector<8x64xf32>
      %53 = vector.shape_cast %46 : vector<8x64xf32> to vector<1x8x64xf32>
      tpu.vector_store %arg8[%c1_49, %c0_50, %c64_51], %53 {strides = array<i32>} : memref<2x8x128xf32, #tpu.memory_space<vmem>>, vector<1x8x64xf32>,
    } else {
    }
    %c0 = arith.constant 0 : index
    %c0_1 = arith.constant 0 : index
    %c0_2 = arith.constant 0 : index
    %3 = vector.load %arg1[%c0, %c0_1, %c0_2] : memref<1x8x64xf32, #tpu.memory_space<vmem>>, vector<1x8x64xf32>
    %4 = vector.shape_cast %3 : vector<1x8x64xf32> to vector<8x64xf32>
    %c0_3 = arith.constant 0 : index
    %c0_4 = arith.constant 0 : index
    %5 = vector.load %arg7[%c0_3, %c0_4] : memref<8x64xf32, #tpu.memory_space<vmem>>, vector<8x64xf32>
    %c0_5 = arith.constant 0 : index
    %c0_6 = arith.constant 0 : index
    %6 = vector.load %arg3[%c0_5, %c0_6] : memref<64x64xf32, #tpu.memory_space<vmem>>, vector<64x64xf32>
    %cst = arith.constant dense<0.000000e+00> : vector<8x64xf32>
    %7 = tpu.matmul %5, %6, %cst {dimension_numbers = #tpu.dot_dimension_numbers<[1], [0], [0], [1], [0, 0, 1, 1], [], []>} : vector<8x64xf32>, vector<64x64xf32>, vector<8x64xf32> -> vector<8x64xf32>
    %8 = arith.addf %4, %7 : vector<8x64xf32>
    %9 = math.tanh %8 : vector<8x64xf32>
    %c0_7 = arith.constant 0 : index
    %c0_8 = arith.constant 0 : index
    %10 = vector.load %arg7[%c0_7, %c0_8] : memref<8x64xf32, #tpu.memory_space<vmem>>, vector<8x64xf32>
    tpu.vector_store %arg7[%c0_7, %c0_8], %9 {strides = array<i32>} : memref<8x64xf32, #tpu.memory_space<vmem>>, vector<8x64xf32>,
    %c0_9 = arith.constant 0 : index
    %c0_10 = arith.constant 0 : index
    %c0_11 = arith.constant 0 : index
    %11 = vector.load %arg8[%c0_9, %c0_10, %c0_11] : memref<2x8x128xf32, #tpu.memory_space<vmem>>, vector<1x8x64xf32>
    %12 = vector.shape_cast %11 : vector<1x8x64xf32> to vector<8x64xf32>
    %13 = vector.shape_cast %9 : vector<8x64xf32> to vector<1x8x64xf32>
    tpu.vector_store %arg8[%c0_9, %c0_10, %c0_11], %13 {strides = array<i32>} : memref<2x8x128xf32, #tpu.memory_space<vmem>>, vector<1x8x64xf32>,
    %c0_12 = arith.constant 0 : index
    %c0_13 = arith.constant 0 : index
    %c0_14 = arith.constant 0 : index
    %14 = vector.load %arg8[%c0_12, %c0_13, %c0_14] : memref<2x8x128xf32, #tpu.memory_space<vmem>>, vector<1x8x128xf32>
    %15 = vector.shape_cast %14 : vector<1x8x128xf32> to vector<8x128xf32>
    %c0_15 = arith.constant 0 : index
    %c0_16 = arith.constant 0 : index
    %c0_17 = arith.constant 0 : index
    %16 = vector.load %arg4[%c0_15, %c0_16, %c0_17] : memref<2x128x64xf32, #tpu.memory_space<vmem>>, vector<1x128x64xf32>
    %17 = vector.shape_cast %16 : vector<1x128x64xf32> to vector<128x64xf32>
    %cst_18 = arith.constant dense<0.000000e+00> : vector<8x64xf32>
    %18 = tpu.matmul %15, %17, %cst_18 {dimension_numbers = #tpu.dot_dimension_numbers<[1], [0], [0], [1], [0, 0, 1, 1], [], []>} : vector<8x128xf32>, vector<128x64xf32>, vector<8x64xf32> -> vector<8x64xf32>
    %c0_19 = arith.constant 0 : index
    %c0_20 = arith.constant 0 : index
    %c0_21 = arith.constant 0 : index
    %19 = vector.load %arg5[%c0_19, %c0_20, %c0_21] : memref<2x1x64xf32, #tpu.memory_space<vmem>>, vector<1x1x64xf32>
    %20 = vector.shape_cast %19 : vector<1x1x64xf32> to vector<1x64xf32>
    %21 = vector.broadcast %20 : vector<1x64xf32> to vector<8x64xf32>
    %22 = arith.addf %18, %21 : vector<8x64xf32>
    %23 = math.tanh %22 : vector<8x64xf32>
    %c0_22 = arith.constant 0 : index
    %c0_23 = arith.constant 0 : index
    %c64 = arith.constant 64 : index
    %24 = vector.load %arg8[%c0_22, %c0_23, %c64] : memref<2x8x128xf32, #tpu.memory_space<vmem>>, vector<1x8x64xf32>
    %25 = vector.shape_cast %24 : vector<1x8x64xf32> to vector<8x64xf32>
    %26 = vector.shape_cast %23 : vector<8x64xf32> to vector<1x8x64xf32>
    tpu.vector_store %arg8[%c0_22, %c0_23, %c64], %26 {strides = array<i32>} : memref<2x8x128xf32, #tpu.memory_space<vmem>>, vector<1x8x64xf32>,
    %c1 = arith.constant 1 : index
    %c0_24 = arith.constant 0 : index
    %c0_25 = arith.constant 0 : index
    %27 = vector.load %arg8[%c1, %c0_24, %c0_25] : memref<2x8x128xf32, #tpu.memory_space<vmem>>, vector<1x8x64xf32>
    %28 = vector.shape_cast %27 : vector<1x8x64xf32> to vector<8x64xf32>
    %29 = vector.shape_cast %23 : vector<8x64xf32> to vector<1x8x64xf32>
    tpu.vector_store %arg8[%c1, %c0_24, %c0_25], %29 {strides = array<i32>} : memref<2x8x128xf32, #tpu.memory_space<vmem>>, vector<1x8x64xf32>,
    %c1_26 = arith.constant 1 : index
    %c0_27 = arith.constant 0 : index
    %c0_28 = arith.constant 0 : index
    %30 = vector.load %arg8[%c1_26, %c0_27, %c0_28] : memref<2x8x128xf32, #tpu.memory_space<vmem>>, vector<1x8x128xf32>
    %31 = vector.shape_cast %30 : vector<1x8x128xf32> to vector<8x128xf32>
    %c1_29 = arith.constant 1 : index
    %c0_30 = arith.constant 0 : index
    %c0_31 = arith.constant 0 : index
    %32 = vector.load %arg4[%c1_29, %c0_30, %c0_31] : memref<2x128x64xf32, #tpu.memory_space<vmem>>, vector<1x128x64xf32>
    %33 = vector.shape_cast %32 : vector<1x128x64xf32> to vector<128x64xf32>
    %cst_32 = arith.constant dense<0.000000e+00> : vector<8x64xf32>
    %34 = tpu.matmul %31, %33, %cst_32 {dimension_numbers = #tpu.dot_dimension_numbers<[1], [0], [0], [1], [0, 0, 1, 1], [], []>} : vector<8x128xf32>, vector<128x64xf32>, vector<8x64xf32> -> vector<8x64xf32>
    %c1_33 = arith.constant 1 : index
    %c0_34 = arith.constant 0 : index
    %c0_35 = arith.constant 0 : index
    %35 = vector.load %arg5[%c1_33, %c0_34, %c0_35] : memref<2x1x64xf32, #tpu.memory_space<vmem>>, vector<1x1x64xf32>
    %36 = vector.shape_cast %35 : vector<1x1x64xf32> to vector<1x64xf32>
    %37 = vector.broadcast %36 : vector<1x64xf32> to vector<8x64xf32>
    %38 = arith.addf %34, %37 : vector<8x64xf32>
    %39 = math.tanh %38 : vector<8x64xf32>
    %c1_36 = arith.constant 1 : index
    %c0_37 = arith.constant 0 : index
    %c64_38 = arith.constant 64 : index
    %40 = vector.load %arg8[%c1_36, %c0_37, %c64_38] : memref<2x8x128xf32, #tpu.memory_space<vmem>>, vector<1x8x64xf32>
    %41 = vector.shape_cast %40 : vector<1x8x64xf32> to vector<8x64xf32>
    %42 = vector.shape_cast %39 : vector<8x64xf32> to vector<1x8x64xf32>
    tpu.vector_store %arg8[%c1_36, %c0_37, %c64_38], %42 {strides = array<i32>} : memref<2x8x128xf32, #tpu.memory_space<vmem>>, vector<1x8x64xf32>,
    %c0_39 = arith.constant 0 : index
    %c0_40 = arith.constant 0 : index
    %c0_41 = arith.constant 0 : index
    %43 = vector.load %arg6[%c0_39, %c0_40, %c0_41] : memref<1x8x64xf32, #tpu.memory_space<vmem>>, vector<1x8x64xf32>
    %44 = vector.shape_cast %43 : vector<1x8x64xf32> to vector<8x64xf32>
    %45 = vector.shape_cast %39 : vector<8x64xf32> to vector<1x8x64xf32>
    tpu.vector_store %arg6[%c0_39, %c0_40, %c0_41], %45 {strides = array<i32>} : memref<1x8x64xf32, #tpu.memory_space<vmem>>, vector<1x8x64xf32>,
    return
  }
  func.func @transform_0(%arg0: i32) -> (i32, i32, i32) {
    %c0_i32 = arith.constant 0 : i32
    %c0_i32_0 = arith.constant 0 : i32
    %c0_i32_1 = arith.constant 0 : i32
    return %arg0, %c0_i32, %c0_i32_0 : i32, i32, i32
  }
  func.func @transform_1(%arg0: i32) -> (i32, i32) {
    %c0_i32 = arith.constant 0 : i32
    %c0_i32_0 = arith.constant 0 : i32
    %c0_i32_1 = arith.constant 0 : i32
    return %c0_i32, %c0_i32_0 : i32, i32
  }
  func.func @transform_2(%arg0: i32) -> (i32, i32) {
    %c0_i32 = arith.constant 0 : i32
    %c0_i32_0 = arith.constant 0 : i32
    %c0_i32_1 = arith.constant 0 : i32
    return %c0_i32, %c0_i32_0 : i32, i32
  }
  func.func @transform_3(%arg0: i32) -> (i32, i32, i32) {
    %c0_i32 = arith.constant 0 : i32
    %c0_i32_0 = arith.constant 0 : i32
    %c0_i32_1 = arith.constant 0 : i32
    %c0_i32_2 = arith.constant 0 : i32
    return %c0_i32, %c0_i32_0, %c0_i32_1 : i32, i32, i32
  }
  func.func @transform_4(%arg0: i32) -> (i32, i32, i32) {
    %c0_i32 = arith.constant 0 : i32
    %c0_i32_0 = arith.constant 0 : i32
    %c0_i32_1 = arith.constant 0 : i32
    %c0_i32_2 = arith.constant 0 : i32
    return %c0_i32, %c0_i32_0, %c0_i32_1 : i32, i32, i32
  }
  func.func @transform_5(%arg0: i32) -> (i32, i32, i32) {
    %c0_i32 = arith.constant 0 : i32
    %c0_i32_0 = arith.constant 0 : i32
    %c0_i32_1 = arith.constant 0 : i32
    return %arg0, %c0_i32, %c0_i32_0 : i32, i32, i32
  }
}

module attributes {stable_mosaic.version = 11 : i64} {
  func.func @_fc_kernel(%arg0: i32, %arg1: memref<32x64xf32, #tpu.memory_space<vmem>>, %arg2: memref<64x128xf32, #tpu.memory_space<vmem>>, %arg3: memref<1x128xf32, #tpu.memory_space<vmem>>, %arg4: memref<32x128xf32, #tpu.memory_space<vmem>>) attributes {dimension_semantics = [#tpu.dimension_semantics<parallel>], iteration_bounds = array<i64: 1>, scalar_prefetch = 0 : i64, scratch_operands = 0 : i64, tpu.core_type = #tpu.core_type<tc>, window_params = [{pipeline_mode = #tpu.pipeline_mode<synchronous>, transform_indices = @transform_0, window_bounds = array<i64: 32, 64>}, {transform_indices = @transform_1, window_bounds = array<i64: 64, 128>}, {transform_indices = @transform_2, window_bounds = array<i64: 1, 128>}, {transform_indices = @transform_3, window_bounds = array<i64: 32, 128>}]} {
    %c0 = arith.constant 0 : index
    %c0_0 = arith.constant 0 : index
    %0 = vector.load %arg1[%c0, %c0_0] : memref<32x64xf32, #tpu.memory_space<vmem>>, vector<32x64xf32>
    %c0_1 = arith.constant 0 : index
    %c0_2 = arith.constant 0 : index
    %1 = vector.load %arg2[%c0_1, %c0_2] : memref<64x128xf32, #tpu.memory_space<vmem>>, vector<64x128xf32>
    %cst = arith.constant dense<0.000000e+00> : vector<32x128xf32>
    %2 = tpu.matmul %0, %1, %cst {dimension_numbers = #tpu.dot_dimension_numbers<[1], [0], [0], [1], [0, 0, 1, 1], [], []>} : vector<32x64xf32>, vector<64x128xf32>, vector<32x128xf32> -> vector<32x128xf32>
    %c0_3 = arith.constant 0 : index
    %c0_4 = arith.constant 0 : index
    %3 = vector.load %arg3[%c0_3, %c0_4] : memref<1x128xf32, #tpu.memory_space<vmem>>, vector<1x128xf32>
    %4 = vector.broadcast %3 : vector<1x128xf32> to vector<32x128xf32>
    %5 = arith.addf %2, %4 : vector<32x128xf32>
    %c0_5 = arith.constant 0 : index
    %c0_6 = arith.constant 0 : index
    %6 = vector.load %arg4[%c0_5, %c0_6] : memref<32x128xf32, #tpu.memory_space<vmem>>, vector<32x128xf32>
    tpu.vector_store %arg4[%c0_5, %c0_6], %5 {strides = array<i32>} : memref<32x128xf32, #tpu.memory_space<vmem>>, vector<32x128xf32>,
    return
  }
  func.func @transform_0(%arg0: i32) -> (i32, i32) {
    %c0_i32 = arith.constant 0 : i32
    %c0_i32_0 = arith.constant 0 : i32
    %c0_i32_1 = arith.constant 0 : i32
    return %c0_i32, %c0_i32_0 : i32, i32
  }
  func.func @transform_1(%arg0: i32) -> (i32, i32) {
    %c0_i32 = arith.constant 0 : i32
    %c0_i32_0 = arith.constant 0 : i32
    return %c0_i32, %arg0 : i32, i32
  }
  func.func @transform_2(%arg0: i32) -> (i32, i32) {
    %c0_i32 = arith.constant 0 : i32
    %c0_i32_0 = arith.constant 0 : i32
    return %c0_i32, %arg0 : i32, i32
  }
  func.func @transform_3(%arg0: i32) -> (i32, i32) {
    %c0_i32 = arith.constant 0 : i32
    %c0_i32_0 = arith.constant 0 : i32
    return %c0_i32, %arg0 : i32, i32
  }
}

</mosaic_0001>

<llo_original>
// kernel: _decoder_pallas.2
$region0: #{_decoder_pallas.2}
  #allocation0 [shape = 'u32[]', space=smem, size = 0x4, offset = 0x4, fixed_abs, tag = 'smem constant byte address 0x4 - core index']
  #allocation1 [shape = 'u32[72,128]{1,0:T(1,128)}', space=vmem, size = 0x9000, scoped, tag = 'internal scratch']
  #allocation2 [shape = 'f32[8,64]{1,0:T(8,128)}', space=vmem, size = 0x1000, scoped, tag = 'scratch operand']
  #allocation3 [shape = 'f32[2,8,128]{2,1,0:T(8,128)}', space=vmem, size = 0x2000, scoped, tag = 'scratch operand']
  %s0 = inlined_call_operand.vmem [shape: f32[4,8,64], index: 0, kind: input, shape index: {}]
  %s1 = inlined_call_operand.vmem [shape: f32[8,64], index: 1, kind: input, shape index: {}]
  %s2 = inlined_call_operand.vmem [shape: f32[64,64], index: 2, kind: input, shape index: {}]
  %s3 = inlined_call_operand.vmem [shape: f32[2,128,64], index: 3, kind: input, shape index: {}]
  %s4 = inlined_call_operand.vmem [shape: f32[2,1,64], index: 4, kind: input, shape index: {}]
  %s5 = inlined_call_operand.vmem [shape: f32[4,8,64], index: 5, kind: output, shape index: {}]
  %s6 = sld [smem:[#allocation0]]
  $region57: #{_decoder_pallas.2} parent=0
    _
  %s8 = ssub.s32 1, %s6
  %s9 = scalar_select 0, %s8, %s6
  loop: start=0, step=1, limit=6
  $region2: #{_decoder_pallas.2} parent=0 // loop_pre_header
    _
  $region3: #{_decoder_pallas.2} parent=0 // loop_header
    %s11 = sphi 0, %s15
    %p12 = scmp.ge.s32.totalorder %s11, 6
    %s21 = sphi 0, %s23
    %s24 = sphi 0, %s21
    %s25 = sphi 0, %s24
    %s41 = sphi 0, %s25
    %s45 = sphi 0, %s45
    %s47 = sphi 0, %s45
    %s48 = sphi 0, %s47
    %s62 = sphi 0, %s48
    %s66 = sphi 0, %s66
    %s68 = sphi 0, %s66
    %s69 = sphi 0, %s68
    %s83 = sphi 0, %s69
    %s87 = sphi 0, %s87
    %s89 = sphi 0, %s87
    %s90 = sphi 0, %s89
    %s104 = sphi 0, %s90
    %s108 = sphi 0, %s108
    %s110 = sphi 0, %s108
    %s111 = sphi 0, %s110
    %s125 = sphi 0, %s111
    %s131 = sphi 0, %s133
    %s134 = sphi 0, %s131
    %s135 = sphi 0, %s134
    %s151 = sphi 0, %s135
  $region4: #{_decoder_pallas.2} parent=0 // loop_header_branch
    %14 = sbr.rel (%p12) target = $region8
  $region5: #{_decoder_pallas.2} parent=0 // loop_body
    %s16 = ssub.s32 %s11, 1
    %s17 = ssub.s32 %s11, 2
    %s18 = sadd.s32 %s11, 1
    %s19 = ssub.s32 %s11, %s18
    %p20 = scmp.eq.s32.totalorder %s19, 0
    %s22 = sadd.s32 %s21, 1
    %s23 = scalar_select %p20, %s21, %s22
    %p26 = pneg %p20
    %p27 = scmp.eq.s32.totalorder %s11, 3
    %p28 = por %p26, %p27
    %p29 = scmp.ne.s32.totalorder %s21, %s24
    %p30 = scmp.eq.s32.totalorder %s11, 0
    %p31 = por %p29, %p30
    %p32 = scmp.ne.s32.totalorder %s21, %s24
    %p33 = scmp.eq.s32.totalorder %s16, 3
    %p34 = por %p32, %p33
    %p35 = scmp.ne.s32.totalorder %s24, %s25
    %p36 = scmp.eq.s32.totalorder %s16, 0
    %p37 = por %p35, %p36
    %p38 = scmp.ne.s32.totalorder %s24, %s25
    %p39 = scmp.eq.s32.totalorder %s17, 3
    %p40 = por %p38, %p39
    %p42 = scmp.ne.s32.totalorder %s25, %s41
    %p43 = scmp.eq.s32.totalorder %s17, 0
    %p44 = por %p42, %p43
    %s46 = sadd.s32 %s45, 1
    %p49 = scmp.eq.s32.totalorder %s11, 3
    %p50 = scmp.ne.s32.totalorder %s45, %s47
    %p51 = scmp.eq.s32.totalorder %s11, 0
    %p52 = por %p50, %p51
    %p53 = scmp.ne.s32.totalorder %s45, %s47
    %p54 = scmp.eq.s32.totalorder %s16, 3
    %p55 = por %p53, %p54
    %p56 = scmp.ne.s32.totalorder %s47, %s48
    %p57 = scmp.eq.s32.totalorder %s16, 0
    %p58 = por %p56, %p57
    %p59 = scmp.ne.s32.totalorder %s47, %s48
    %p60 = scmp.eq.s32.totalorder %s17, 3
    %p61 = por %p59, %p60
    %p63 = scmp.ne.s32.totalorder %s48, %s62
    %p64 = scmp.eq.s32.totalorder %s17, 0
    %p65 = por %p63, %p64
    %s67 = sadd.s32 %s66, 1
    %p70 = scmp.eq.s32.totalorder %s11, 3
    %p71 = scmp.ne.s32.totalorder %s66, %s68
    %p72 = scmp.eq.s32.totalorder %s11, 0
    %p73 = por %p71, %p72
    %p74 = scmp.ne.s32.totalorder %s66, %s68
    %p75 = scmp.eq.s32.totalorder %s16, 3
    %p76 = por %p74, %p75
    %p77 = scmp.ne.s32.totalorder %s68, %s69
    %p78 = scmp.eq.s32.totalorder %s16, 0
    %p79 = por %p77, %p78
    %p80 = scmp.ne.s32.totalorder %s68, %s69
    %p81 = scmp.eq.s32.totalorder %s17, 3
    %p82 = por %p80, %p81
    %p84 = scmp.ne.s32.totalorder %s69, %s83
    %p85 = scmp.eq.s32.totalorder %s17, 0
    %p86 = por %p84, %p85
    %s88 = sadd.s32 %s87, 1
    %p91 = scmp.eq.s32.totalorder %s11, 3
    %p92 = scmp.ne.s32.totalorder %s87, %s89
    %p93 = scmp.eq.s32.totalorder %s11, 0
    %p94 = por %p92, %p93
    %p95 = scmp.ne.s32.totalorder %s87, %s89
    %p96 = scmp.eq.s32.totalorder %s16, 3
    %p97 = por %p95, %p96
    %p98 = scmp.ne.s32.totalorder %s89, %s90
    %p99 = scmp.eq.s32.totalorder %s16, 0
    %p100 = por %p98, %p99
    %p101 = scmp.ne.s32.totalorder %s89, %s90
    %p102 = scmp.eq.s32.totalorder %s17, 3
    %p103 = por %p101, %p102
    %p105 = scmp.ne.s32.totalorder %s90, %s104
    %p106 = scmp.eq.s32.totalorder %s17, 0
    %p107 = por %p105, %p106
    %s109 = sadd.s32 %s108, 1
    %p112 = scmp.eq.s32.totalorder %s11, 3
    %p113 = scmp.ne.s32.totalorder %s108, %s110
    %p114 = scmp.eq.s32.totalorder %s11, 0
    %p115 = por %p113, %p114
    %p116 = scmp.ne.s32.totalorder %s108, %s110
    %p117 = scmp.eq.s32.totalorder %s16, 3
    %p118 = por %p116, %p117
    %p119 = scmp.ne.s32.totalorder %s110, %s111
    %p120 = scmp.eq.s32.totalorder %s16, 0
    %p121 = por %p119, %p120
    %p122 = scmp.ne.s32.totalorder %s110, %s111
    %p123 = scmp.eq.s32.totalorder %s17, 3
    %p124 = por %p122, %p123
    %p126 = scmp.ne.s32.totalorder %s111, %s125
    %p127 = scmp.eq.s32.totalorder %s17, 0
    %p128 = por %p126, %p127
    %s129 = ssub.s32 %s11, %s18
    %p130 = scmp.eq.s32.totalorder %s129, 0
    %s132 = sadd.s32 %s131, 1
    %s133 = scalar_select %p130, %s131, %s132
    %p136 = pneg %p130
    %p137 = scmp.eq.s32.totalorder %s11, 3
    %p138 = por %p136, %p137
    %p139 = scmp.ne.s32.totalorder %s131, %s134
    %p140 = scmp.eq.s32.totalorder %s11, 0
    %p141 = por %p139, %p140
    %p142 = scmp.ne.s32.totalorder %s131, %s134
    %p143 = scmp.eq.s32.totalorder %s16, 3
    %p144 = por %p142, %p143
    %p145 = scmp.ne.s32.totalorder %s134, %s135
    %p146 = scmp.eq.s32.totalorder %s16, 0
    %p147 = por %p145, %p146
    %p148 = scmp.ne.s32.totalorder %s134, %s135
    %p149 = scmp.eq.s32.totalorder %s17, 3
    %p150 = por %p148, %p149
    %p152 = scmp.ne.s32.totalorder %s135, %s151
    %p153 = scmp.eq.s32.totalorder %s17, 0
    %p154 = por %p152, %p153
    %p155 = scmp.le.s32.totalorder 1, %s11
    %p156 = scmp.lt.s32.totalorder %s11, 5
    %p157 = pnand %p155, %p156
    %p158 = pneg %p157
    // Predicated region
    $region9: #{_decoder_pallas.2} parent=5 // pred_check
      _
    $region10: #{_decoder_pallas.2} parent=5 // pred_check_branch
      %160 = sbr.rel (%p157) target = $region12
    $region11: #{_decoder_pallas.2} parent=5 // pred_region
      %s161 = ssub.s32 %s11, 1
      // Predicated region
      $region13: #{_decoder_pallas.2} parent=11 // pred_check
        %p162 = pneg %p58
      $region14: #{_decoder_pallas.2} parent=11 // pred_check_branch
        %164 = sbr.rel (%p162) target = $region16
      $region15: #{_decoder_pallas.2} parent=11 // pred_region
        _
      $region16: #{_decoder_pallas.2} parent=11 // pred_fallthru
        _
      // Predicated region
      $region17: #{_decoder_pallas.2} parent=11 // pred_check
        %p165 = pneg %p79
      $region18: #{_decoder_pallas.2} parent=11 // pred_check_branch
        %167 = sbr.rel (%p165) target = $region20
      $region19: #{_decoder_pallas.2} parent=11 // pred_region
        _
      $region20: #{_decoder_pallas.2} parent=11 // pred_fallthru
        _
      // Predicated region
      $region21: #{_decoder_pallas.2} parent=11 // pred_check
        %p168 = pneg %p100
      $region22: #{_decoder_pallas.2} parent=11 // pred_check_branch
        %170 = sbr.rel (%p168) target = $region24
      $region23: #{_decoder_pallas.2} parent=11 // pred_region
        _
      $region24: #{_decoder_pallas.2} parent=11 // pred_fallthru
        _
      // Predicated region
      $region25: #{_decoder_pallas.2} parent=11 // pred_check
        %p171 = pneg %p121
      $region26: #{_decoder_pallas.2} parent=11 // pred_check_branch
        %173 = sbr.rel (%p171) target = $region28
      $region27: #{_decoder_pallas.2} parent=11 // pred_region
        _
      $region28: #{_decoder_pallas.2} parent=11 // pred_fallthru
        _
    $region12: #{_decoder_pallas.2} parent=5 // pred_fallthru
      _
    %p174 = scmp.lt.s32.totalorder %s11, 4
    // Predicated region
    $region29: #{_decoder_pallas.2} parent=5 // pred_check
      %p175 = pneg %p174
    $region30: #{_decoder_pallas.2} parent=5 // pred_check_branch
      %177 = sbr.rel (%p175) target = $region32
    $region31: #{_decoder_pallas.2} parent=5 // pred_region
      // Predicated region
      $region33: #{_decoder_pallas.2} parent=31 // pred_check
        %p178 = pneg %p31
      $region34: #{_decoder_pallas.2} parent=31 // pred_check_branch
        %180 = sbr.rel (%p178) target = $region36
      $region35: #{_decoder_pallas.2} parent=31 // pred_region
        %p181 = scmp.lt.s32.totalorder %s11, 3
        %s182 = scalar_select %p181, %s11, 3
        %s183 = smul.addr %s182, 8
        %s184 = scalar_lea.vmem %s0, %s183
      $region36: #{_decoder_pallas.2} parent=31 // pred_fallthru
        _
    $region32: #{_decoder_pallas.2} parent=5 // pred_fallthru
      _
    %p185 = scmp.le.s32.totalorder 1, %s11
    %p186 = scmp.lt.s32.totalorder %s11, 5
    %p187 = pnand %p185, %p186
    %p188 = pneg %p187
    // Predicated region
    $region37: #{_decoder_pallas.2} parent=5 // pred_check
      _
    $region38: #{_decoder_pallas.2} parent=5 // pred_check_branch
      %190 = sbr.rel (%p187) target = $region40
    $region39: #{_decoder_pallas.2} parent=5 // pred_region
      %s191 = ssub.s32 %s11, 1
      %p192 = scmp.lt.s32.totalorder %s16, 3
      %s193 = scalar_select %p192, %s16, 3
      %s194 = smul.addr %s193, 8
      %s195 = scalar_lea.vmem %s0, %s194
      %p196 = pneg %p37
      %p197 = pneg %p34
      %p198 = pneg %p58
      %p199 = pneg %p55
      %p200 = pneg %p79
      %p201 = pneg %p76
      %p202 = pneg %p100
      %p203 = pneg %p97
      %p204 = pneg %p121
      %p205 = pneg %p118
      %p206 = pneg %p147
      %p207 = pneg %p144
      %p208 = scmp.lt.s32.totalorder %s16, 3
      %s209 = scalar_select %p208, %s16, 3
      %s210 = smul.addr %s209, 8
      %s211 = scalar_lea.vmem %s5, %s210
      %p212 = scmp.lt.s32.totalorder %s16, 3
      %s213 = scalar_select %p212, %s16, 3
      %s214 = smul.addr %s213, 8
      %s215 = scalar_lea.vmem %s0, %s214
      %p216 = scmp.lt.s32.totalorder %s16, 3
      %s217 = scalar_select %p216, %s16, 3
      %s218 = smul.addr %s217, 8
      %s219 = scalar_lea.vmem %s5, %s218
      %p220 = scmp.eq.s32.totalorder %s16, 0
      // Predicated region
      $region41: #{_decoder_pallas.2} parent=39 // pred_check
        %p221 = pneg %p220
      $region42: #{_decoder_pallas.2} parent=39 // pred_check_branch
        %223 = sbr.rel (%p221) target = $region44
      $region43: #{_decoder_pallas.2} parent=39 // pred_region
        %v224 = vld [vmem:[%s1] sm:$0xff]
        %vm225 = vcmask 523264
        %226 = vst.msk [vmem:[#allocation2] sm:$0xff] %vm225, %v224
        %228 = vrot.lane.b32.xlu0 %v224, 64
        %v229 = vpop.permute.xlu0 %228
        %vm231 = vcmask 1048064
        %232 = vst.msk [vmem:[#allocation3] sm:$0xff] %vm231, %v229
        %s233 = scalar_lea.vmem [#allocation3], 8
        %234 = vst.msk [vmem:[%s233] sm:$0xff] %vm231, %v229
      $region44: #{_decoder_pallas.2} parent=39 // pred_fallthru
        _
      %v235 = vld [vmem:[%s215] sm:$0xff]
      %v236 = vld [vmem:[#allocation2] sm:$0xff]
      %v237 = vld [vmem:[%s2] sm:$0xff]
      %v238 = vld [vmem:[%s2 + $0x8] sm:$0xff]
      %v239 = vld [vmem:[%s2 + $0x10] sm:$0xff]
      %v240 = vld [vmem:[%s2 + $0x18] sm:$0xff]
      %v241 = vld [vmem:[%s2 + $0x20] sm:$0xff]
      %v242 = vld [vmem:[%s2 + $0x28] sm:$0xff]
      %v243 = vld [vmem:[%s2 + $0x30] sm:$0xff]
      %v244 = vld [vmem:[%s2 + $0x38] sm:$0xff]
      %vm245 = vcmask 523264
      %v247 = vsel %vm245, %v236, 0
      %249 = vmatpush.msra.mxu0 0.0
      %250 = vmatpush.msra.mxu0 0.0
      %251 = vmatpush.msra.mxu0 0.0
      %252 = vmatpush.msra.mxu0 0.0
      %253 = vmatpush.msra.mxu0 0.0
      %254 = vmatpush.msra.mxu0 0.0
      %255 = vmatpush.msra.mxu0 0.0
      %256 = vmatpush.msra.mxu0 0.0
      %257 = vmatpush.msra.mxu0 %v244
      %258 = vmatpush.msra.mxu0 %v243
      %259 = vmatpush.msra.mxu0 %v242
      %260 = vmatpush.msra.mxu0 %v241
      %261 = vmatpush.msra.mxu0 %v240
      %262 = vmatpush.msra.mxu0 %v239
      %263 = vmatpush.msra.mxu0 %v238
      %264 = vmatpush.msra.mxu0 %v237
      %265 = vmatmul.f32.gmra.mxu0 %v247
      %v266 = vpop.f32.mrf.mxu0
      %v267 = vadd.f32 0.0, %v266
      %268 = vdwg.mxu0
      %v269 = vadd.f32 %v235, %v267
      %v270 = vtanh.pop %v269
      %271 = vst.msk [vmem:[#allocation2] sm:$0xff] %vm245, %v270
      %272 = vst.msk [vmem:[#allocation3] sm:$0xff] %vm245, %v270
      %v273 = vld [vmem:[#allocation3] sm:$0xff]
      %v274 = vld [vmem:[%s3] sm:$0xff]
      %v275 = vld [vmem:[%s3 + $0x8] sm:$0xff]
      %v276 = vld [vmem:[%s3 + $0x10] sm:$0xff]
      %v277 = vld [vmem:[%s3 + $0x18] sm:$0xff]
      %v278 = vld [vmem:[%s3 + $0x20] sm:$0xff]
      %v279 = vld [vmem:[%s3 + $0x28] sm:$0xff]
      %v280 = vld [vmem:[%s3 + $0x30] sm:$0xff]
      %v281 = vld [vmem:[%s3 + $0x38] sm:$0xff]
      %v282 = vld [vmem:[%s3 + $0x40] sm:$0xff]
      %v283 = vld [vmem:[%s3 + $0x48] sm:$0xff]
      %v284 = vld [vmem:[%s3 + $0x50] sm:$0xff]
      %v285 = vld [vmem:[%s3 + $0x58] sm:$0xff]
      %v286 = vld [vmem:[%s3 + $0x60] sm:$0xff]
      %v287 = vld [vmem:[%s3 + $0x68] sm:$0xff]
      %v288 = vld [vmem:[%s3 + $0x70] sm:$0xff]
      %v289 = vld [vmem:[%s3 + $0x78] sm:$0xff]
      %v290 = vld [vmem:[%s4] sm:$0x1]
      %v292 = vperm.slane %v290, 0
      %294 = vmatpush.msra.mxu0 %v289
      %295 = vmatpush.msra.mxu0 %v288
      %296 = vmatpush.msra.mxu0 %v287
      %297 = vmatpush.msra.mxu0 %v286
      %298 = vmatpush.msra.mxu0 %v285
      %299 = vmatpush.msra.mxu0 %v284
      %300 = vmatpush.msra.mxu0 %v283
      %301 = vmatpush.msra.mxu0 %v282
      %302 = vmatpush.msra.mxu0 %v281
      %303 = vmatpush.msra.mxu0 %v280
      %304 = vmatpush.msra.mxu0 %v279
      %305 = vmatpush.msra.mxu0 %v278
      %306 = vmatpush.msra.mxu0 %v277
      %307 = vmatpush.msra.mxu0 %v276
      %308 = vmatpush.msra.mxu0 %v275
      %309 = vmatpush.msra.mxu0 %v274
      %310 = vmatmul.f32.gmra.mxu0 %v273
      %v311 = vpop.f32.mrf.mxu0
      %v312 = vadd.f32 %v292, %v311
      %313 = vdwg.mxu0
      %v314 = vtanh.pop %v312
      %316 = vrot.lane.b32.xlu0 %v314, 64
      %v317 = vpop.permute.xlu0 %316
      %vm319 = vcmask 1048064
      %320 = vst.msk [vmem:[#allocation3] sm:$0xff] %vm319, %v317
      %s321 = scalar_lea.vmem [#allocation3], 8
      %322 = vst.msk [vmem:[%s321] sm:$0xff] %vm245, %v314
      %v323 = vld [vmem:[%s321] sm:$0xff]
      %s324 = scalar_lea.vmem %s3, 128
      %v325 = vld [vmem:[%s324] sm:$0xff]
      %v326 = vld [vmem:[%s324 + $0x8] sm:$0xff]
      %v327 = vld [vmem:[%s324 + $0x10] sm:$0xff]
      %v328 = vld [vmem:[%s324 + $0x18] sm:$0xff]
      %v329 = vld [vmem:[%s324 + $0x20] sm:$0xff]
      %v330 = vld [vmem:[%s324 + $0x28] sm:$0xff]
      %v331 = vld [vmem:[%s324 + $0x30] sm:$0xff]
      %v332 = vld [vmem:[%s324 + $0x38] sm:$0xff]
      %v333 = vld [vmem:[%s324 + $0x40] sm:$0xff]
      %v334 = vld [vmem:[%s324 + $0x48] sm:$0xff]
      %v335 = vld [vmem:[%s324 + $0x50] sm:$0xff]
      %v336 = vld [vmem:[%s324 + $0x58] sm:$0xff]
      %v337 = vld [vmem:[%s324 + $0x60] sm:$0xff]
      %v338 = vld [vmem:[%s324 + $0x68] sm:$0xff]
      %v339 = vld [vmem:[%s324 + $0x70] sm:$0xff]
      %v340 = vld [vmem:[%s324 + $0x78] sm:$0xff]
      %s341 = scalar_lea.vmem %s4, 1
      %v342 = vld [vmem:[%s341] sm:$0x1]
      %v344 = vperm.slane %v342, 0
      %346 = vmatpush.msra.mxu0 %v340
      %347 = vmatpush.msra.mxu0 %v339
      %348 = vmatpush.msra.mxu0 %v338
      %349 = vmatpush.msra.mxu0 %v337
      %350 = vmatpush.msra.mxu0 %v336
      %351 = vmatpush.msra.mxu0 %v335
      %352 = vmatpush.msra.mxu0 %v334
      %353 = vmatpush.msra.mxu0 %v333
      %354 = vmatpush.msra.mxu0 %v332
      %355 = vmatpush.msra.mxu0 %v331
      %356 = vmatpush.msra.mxu0 %v330
      %357 = vmatpush.msra.mxu0 %v329
      %358 = vmatpush.msra.mxu0 %v328
      %359 = vmatpush.msra.mxu0 %v327
      %360 = vmatpush.msra.mxu0 %v326
      %361 = vmatpush.msra.mxu0 %v325
      %362 = vmatmul.f32.gmra.mxu0 %v323
      %v363 = vpop.f32.mrf.mxu0
      %v364 = vadd.f32 %v344, %v363
      %365 = vdwg.mxu0
      %v366 = vtanh.pop %v364
      %368 = vrot.lane.b32.xlu0 %v366, 64
      %v369 = vpop.permute.xlu0 %368
      %371 = vst.msk [vmem:[%s321] sm:$0xff] %vm319, %v369
      %372 = vst.msk [vmem:[%s219] sm:$0xff] %vm245, %v366
      %p373 = scmp.lt.s32.totalorder %s16, 3
      %s374 = scalar_select %p373, %s16, 3
      %s375 = smul.addr %s374, 8
      %s376 = scalar_lea.vmem %s5, %s375
      // Predicated region
      $region45: #{_decoder_pallas.2} parent=39 // pred_check
        %p377 = pneg %p144
      $region46: #{_decoder_pallas.2} parent=39 // pred_check_branch
        %379 = sbr.rel (%p377) target = $region48
      $region47: #{_decoder_pallas.2} parent=39 // pred_region
        _
      $region48: #{_decoder_pallas.2} parent=39 // pred_fallthru
        _
    $region40: #{_decoder_pallas.2} parent=5 // pred_fallthru
      _
    %p380 = scmp.le.s32.totalorder 2, %s11
    // Predicated region
    $region49: #{_decoder_pallas.2} parent=5 // pred_check
      %p381 = pneg %p380
    $region50: #{_decoder_pallas.2} parent=5 // pred_check_branch
      %383 = sbr.rel (%p381) target = $region52
    $region51: #{_decoder_pallas.2} parent=5 // pred_region
      %s384 = ssub.s32 %s11, 2
      // Predicated region
      $region53: #{_decoder_pallas.2} parent=51 // pred_check
        %p385 = pneg %p150
      $region54: #{_decoder_pallas.2} parent=51 // pred_check_branch
        %387 = sbr.rel (%p385) target = $region56
      $region55: #{_decoder_pallas.2} parent=51 // pred_region
        %p388 = scmp.lt.s32.totalorder %s17, 3
        %s389 = scalar_select %p388, %s17, 3
        %s390 = smul.addr %s389, 8
        %s391 = scalar_lea.vmem %s5, %s390
      $region56: #{_decoder_pallas.2} parent=51 // pred_fallthru
        _
    $region52: #{_decoder_pallas.2} parent=5 // pred_fallthru
      _
  $region6: #{_decoder_pallas.2} parent=0 // loop_footer
    %s15 = sadd.s32 1, %s11
  $region7: #{_decoder_pallas.2} parent=0 // loop_footer_branch
    %10 = sbr.rel target = $region3
  $region8: #{_decoder_pallas.2} parent=0 // loop_exit
    _

// kernel: _decoder_pallas.3
$region0: #{_decoder_pallas.3}
  #allocation0 [shape = 'u32[]', space=smem, size = 0x4, offset = 0x4, fixed_abs, tag = 'smem constant byte address 0x4 - core index']
  #allocation1 [shape = 'u32[72,128]{1,0:T(1,128)}', space=vmem, size = 0x9000, scoped, tag = 'internal scratch']
  %s0 = inlined_call_operand.vmem [shape: f32[32,64], index: 0, kind: input, shape index: {}]
  %s1 = inlined_call_operand.vmem [shape: f32[64,128], index: 1, kind: input, shape index: {}]
  %s2 = inlined_call_operand.vmem [shape: f32[1,128], index: 2, kind: input, shape index: {}]
  %s3 = inlined_call_operand.hbm [shape: f32[32,128], index: 3, kind: output, shape index: {}]
  %s4 = sld [smem:[#allocation0]]
  $region22: #{_decoder_pallas.3} parent=0
    _
  %s6 = ssub.s32 1, %s4
  %s7 = scalar_select 0, %s6, %s4
  $region1: #{_decoder_pallas.3} parent=0
    #allocation2 [shape = 'u8[16384]{0}', space=vmem, size = 0x4000, scoped, tag = 'output window, operand 0, single buffered']
    #allocation3 [shape = 's32[1]{0}', space=sflag, size = 0x4, scoped, tag = 'scoped memory for _decoder_pallas.3']
    %8 = vsyncpa [#allocation3], 0
    // Predicated region
    $region2: #{_decoder_pallas.3} parent=1 // pred_check
      _
    $region3: #{_decoder_pallas.3} parent=1 // pred_check_branch
      %10 = sbr.rel (0) target = $region5
    $region4: #{_decoder_pallas.3} parent=1 // pred_region
      _
    $region5: #{_decoder_pallas.3} parent=1 // pred_fallthru
      _
    // Predicated region
    $region6: #{_decoder_pallas.3} parent=1 // pred_check
      _
    $region7: #{_decoder_pallas.3} parent=1 // pred_check_branch
      %12 = sbr.rel (0) target = $region9
    $region8: #{_decoder_pallas.3} parent=1 // pred_region
      _
    $region9: #{_decoder_pallas.3} parent=1 // pred_fallthru
      _
    // Predicated region
    $region10: #{_decoder_pallas.3} parent=1 // pred_check
      _
    $region11: #{_decoder_pallas.3} parent=1 // pred_check_branch
      %14 = sbr.rel (0) target = $region13
    $region12: #{_decoder_pallas.3} parent=1 // pred_region
      _
    $region13: #{_decoder_pallas.3} parent=1 // pred_fallthru
      _
    %v15 = vld [vmem:[%s0] sm:$0xff]
    %v16 = vld [vmem:[%s0 + $0x8] sm:$0xff]
    %v17 = vld [vmem:[%s0 + $0x10] sm:$0xff]
    %v18 = vld [vmem:[%s0 + $0x18] sm:$0xff]
    %v19 = vld [vmem:[%s1] sm:$0xff]
    %v20 = vld [vmem:[%s1 + $0x8] sm:$0xff]
    %v21 = vld [vmem:[%s1 + $0x10] sm:$0xff]
    %v22 = vld [vmem:[%s1 + $0x18] sm:$0xff]
    %v23 = vld [vmem:[%s1 + $0x20] sm:$0xff]
    %v24 = vld [vmem:[%s1 + $0x28] sm:$0xff]
    %v25 = vld [vmem:[%s1 + $0x30] sm:$0xff]
    %v26 = vld [vmem:[%s1 + $0x38] sm:$0xff]
    %v27 = vld [vmem:[%s2] sm:$0x1]
    %v29 = vperm.slane %v27, 0
    %vm31 = vcmask 523264
    %v33 = vsel %vm31, %v15, 0
    %v36 = vsel %vm31, %v16, 0
    %v39 = vsel %vm31, %v17, 0
    %v42 = vsel %vm31, %v18, 0
    %44 = vmatpush.msra.mxu0 0.0
    %45 = vmatpush.msra.mxu0 0.0
    %46 = vmatpush.msra.mxu0 0.0
    %47 = vmatpush.msra.mxu0 0.0
    %48 = vmatpush.msra.mxu0 0.0
    %49 = vmatpush.msra.mxu0 0.0
    %50 = vmatpush.msra.mxu0 0.0
    %51 = vmatpush.msra.mxu0 0.0
    %52 = vmatpush.msra.mxu0 %v26
    %53 = vmatpush.msra.mxu0 %v25
    %54 = vmatpush.msra.mxu0 %v24
    %55 = vmatpush.msra.mxu0 %v23
    %56 = vmatpush.msra.mxu0 %v22
    %57 = vmatpush.msra.mxu0 %v21
    %58 = vmatpush.msra.mxu0 %v20
    %59 = vmatpush.msra.mxu0 %v19
    %60 = vmatmul.f32.gmra.mxu0 %v33
    %v61 = vpop.f32.mrf.mxu0
    %v62 = vadd.f32 %v29, %v61
    %63 = vmatmul.f32.gmra.mxu0 %v36
    %v64 = vpop.f32.mrf.mxu0
    %v65 = vadd.f32 %v29, %v64
    %66 = vmatmul.f32.gmra.mxu0 %v39
    %v67 = vpop.f32.mrf.mxu0
    %v68 = vadd.f32 %v29, %v67
    %69 = vmatmul.f32.gmra.mxu0 %v42
    %v70 = vpop.f32.mrf.mxu0
    %v71 = vadd.f32 %v29, %v70
    %72 = vdwg.mxu0
    %73 = vst [vmem:[#allocation2] sm:$0xff] %v62
    %74 = vst [vmem:[#allocation2 + $0x8] sm:$0xff] %v65
    %75 = vst [vmem:[#allocation2 + $0x10] sm:$0xff] %v68
    %76 = vst [vmem:[#allocation2 + $0x18] sm:$0xff] %v71
    // Predicated region
    $region14: #{_decoder_pallas.3} parent=1 // pred_check
      _
    $region15: #{_decoder_pallas.3} parent=1 // pred_check_branch
      %78 = sbr.rel (0) target = $region17
    $region16: #{_decoder_pallas.3} parent=1 // pred_region
      %80 = vsyncadd [#allocation3], 0
      %s81 = sshll.u32 [#allocation2], 4
      %s82 = int_to_ptr.vmem [resolvable:$true] %s81
      %s83 = sshll.u32 %s3, 4
      %s84 = int_to_ptr.hbm [resolvable:$true] %s83
      %89 = dma.vmem_to_hbm [thread:$0]  %s82, 512, %s84, [#allocation3], 128, 128, 8
    $region17: #{_decoder_pallas.3} parent=1 // pred_fallthru
      _
    // Predicated region
    $region18: #{_decoder_pallas.3} parent=1 // pred_check
      _
    $region19: #{_decoder_pallas.3} parent=1 // pred_check_branch
      %91 = sbr.rel (0) target = $region21
    $region20: #{_decoder_pallas.3} parent=1 // pred_region
      %93 = dma.done [#allocation3], 512
    $region21: #{_decoder_pallas.3} parent=1 // pred_fallthru
      _
    %94 = vsyncpa [#allocation3], 1

</llo_original>
